<compile_context>
chip_gen: v7x
topology: tpu7x:2x2x1
jax: 0.10.0
libtpu: 0.0.40
codegen_flags: <defaults>
</compile_context>

<pallas_src>
import jax
import jax.numpy as jnp
import numpy as np
from jax.experimental import pallas as pl
from jax.experimental.pallas import tpu as pltpu


def _ifft2_real_kernel(x_ref, cdsd_ref, csns_ref, o_ref):
    """One (batch-block, hidden-tile) grid step.

    x_ref    : (BB, S, D)    f32  input slab (cast to bf16 in-kernel, post-DMA)
    cdsd_ref : (1, D, 2*TD)  bf16 [C_D[:, tile] | S_D[:, tile]]
    csns_ref : (S, 2*S)      bf16 [C_S | -S_S]
    o_ref    : (BB, S, TD)   f32  output tile
    """
    cdsd = cdsd_ref[0]                     # (D, 2*TD) bf16
    csns = csns_ref[...]                   # (S, 2*S)  bf16
    td = cdsd.shape[-1] // 2
    bb = x_ref.shape[0]
    for bi in range(bb):                   # static unroll; BB is small
        # In-kernel f32 -> bf16 cast (review item: don't cast in the wrapper).
        x = x_ref[bi].astype(jnp.bfloat16)                            # (S, D)
        # Stage 1: hidden-dim IDFT; real & imag halves in one MXU matmul.
        u = jnp.dot(x, cdsd, preferred_element_type=jnp.float32)      # (S, 2*TD) f32
        # Stack halves vertically; cast each half at its use site.
        u2 = jnp.concatenate(
            [u[:, :td].astype(jnp.bfloat16),
             u[:, td:].astype(jnp.bfloat16)], axis=0)                 # (2*S, TD)
        # Stage 2: seq-dim IDFT (real part only) as ONE matmul vs [C_S | -S_S].
        o_ref[bi] = jnp.dot(
            csns, u2, preferred_element_type=jnp.float32).astype(o_ref.dtype)


def _idft_parts(n: int):
    """cos/sin parts of the size-n inverse-DFT matrix (float32, /n scaled)."""
    j = np.arange(n)
    ang = 2.0 * np.pi * np.outer(j, j) / float(n)
    return (np.cos(ang) / n).astype(np.float32), (np.sin(ang) / n).astype(np.float32)


def _usable_vmem_bytes() -> int:
    """~85% of this generation's physical VMEM (v7x: 64 MiB; v5e/v6e: 128 MiB)."""
    try:
        cap = int(pltpu.get_tpu_info().vmem_capacity_bytes)
    except Exception:
        cap = 128 << 20
    return int(0.85 * cap)


def inverse_fourier_transform_layer(hidden_states):
    """JAX/Pallas equivalent of InverseFourierTransformLayer.forward.

    hidden_states: tuple/list whose first element is a real (B, S, D) array.
    Returns a 1-tuple with Re(ifft(ifft(x, dim=-1), dim=-2)) in float32.
    """
    x = hidden_states[0]
    assert x.ndim == 3, "expected (batch, seq, hidden)"
    b, s, d = x.shape
    x_bytes = np.dtype(x.dtype).itemsize

    usable = _usable_vmem_bytes()
    const_budget = int(0.6 * usable)

    # [C_S | -S_S] stays whole-array VMEM resident.
    # TODO(synk): for very large S (2*S*S*2B approaching VMEM, e.g. S>=4096 on
    # v7x) stream row tiles of [C_S | -S_S] over an extra seq grid axis.
    csns_bytes = s * (2 * s) * 2

    # ---- hidden-dim (output-column) tile TD --------------------------------
    cdsd_full_bytes = d * (2 * d) * 2
    if d % 128 != 0 or csns_bytes + cdsd_full_bytes <= const_budget:
        td = d                                   # full slab, VMEM resident
    else:
        # Largest multiple-of-128 divisor of d whose double-buffered stream fits.
        cands = [t for t in range(128, d + 1, 128) if d % t == 0]
        td = cands[0]
        for t in reversed(cands):
            if csns_bytes + 2 * d * (2 * t) * 2 <= const_budget:
                td = t
                break
    ndt = d // td

    # ---- batch block BB -----------------------------------------------------
    def _fits_bb(cand):
        cdsd_kernel = cdsd_full_bytes if ndt == 1 else 2 * d * (2 * td) * 2
        inter = s * (2 * td) * 4 + (2 * s) * td * 2      # u (f32) + stacked bf16
        need = (csns_bytes + cdsd_kernel + inter
                + 2 * cand * s * d * x_bytes             # x, double-buffered
                + 2 * cand * s * td * 4)                 # out, double-buffered
        return need <= usable

    bb = 1
    for cand in range(1, min(b, 8) + 1):
        if b % cand == 0 and _fits_bb(cand):
            bb = cand

    # ---- keep >=2 independent parallel steps when possible (v7x has 2 TCs) --
    if (b // bb) * ndt < 2:
        if b >= 2:
            bb = max(t for t in range(1, b // 2 + 1) if b % t == 0)
        elif d % 256 == 0 and ndt == 1:
            td = d // 2
            ndt = 2
    nb = b // bb

    # ---- host-built constant matrices (bf16 MXU operands) -------------------
    cs_np, ss_np = _idft_parts(s)
    cd_np, sd_np = _idft_parts(d)
    csns = jnp.asarray(np.concatenate([cs_np, -ss_np], axis=1), dtype=jnp.bfloat16)
    cdsd_np = np.stack(
        [np.concatenate([cd_np[:, j * td:(j + 1) * td],
                         sd_np[:, j * td:(j + 1) * td]], axis=1)
         for j in range(ndt)], axis=0)                        # (NDT, D, 2*TD)
    cdsd = jnp.asarray(cdsd_np, dtype=jnp.bfloat16)

    vmem_resident = pl.BlockSpec(memory_space=pltpu.MemorySpace.VMEM)
    if ndt == 1:
        cdsd_spec = vmem_resident                             # copied once
    else:
        # Streamed column tiles; bump pipeline_mode=pl.Buffered(3) only if a
        # profile shows exposed DMA and the per-generation VMEM budget allows.
        cdsd_spec = pl.BlockSpec((1, d, 2 * td), lambda i, j: (j, 0, 0))

    in_specs = [
        pl.BlockSpec((bb, s, d), lambda i, j: (i, 0, 0)),     # x: one batch block
        cdsd_spec,                                            # [C_D | S_D]
        vmem_resident,                                        # [C_S | -S_S]
    ]
    out_spec = pl.BlockSpec((bb, s, td), lambda i, j: (i, 0, j))

    # ---- generation-aware scoped-VMEM limit ---------------------------------
    cdsd_kernel = cdsd_full_bytes if ndt == 1 else 2 * d * (2 * td) * 2
    inter = s * (2 * td) * 4 + (2 * s) * td * 2
    est = (csns_bytes + cdsd_kernel + inter
           + 2 * bb * s * d * x_bytes + 2 * bb * s * td * 4)
    vmem_limit = int(min(usable, max(2 * est, 32 << 20)))

    out = pl.pallas_call(
        _ifft2_real_kernel,
        out_shape=jax.ShapeDtypeStruct((b, s, d), jnp.float32),
        grid_spec=pltpu.PrefetchScalarGridSpec(
            num_scalar_prefetch=0,
            grid=(nb, ndt),
            in_specs=in_specs,
            out_specs=out_spec),
        compiler_params=pltpu.CompilerParams(
            dimension_semantics=("parallel", "parallel"),
            vmem_limit_bytes=vmem_limit),
    )(x, cdsd, csns)
    return (out,)


if __name__ == "__main__":
    key = jax.random.PRNGKey(0)
    B, S, D = 2, 8, 32
    x = jax.random.normal(key, (B, S, D), dtype=jnp.float32)

    (out,) = inverse_fourier_transform_layer((x,))
    out = jax.block_until_ready(out)

    # Sanity check vs jnp.fft (same math as torch.fft.ifft(ifft(x,-1),-2).real).
    # bf16 MXU operands -> loosened tolerance relative to a pure-f32 version.
    ref = jnp.real(jnp.fft.ifft(jnp.fft.ifft(x, axis=-1), axis=-2))
    np.testing.assert_allclose(np.asarray(out), np.asarray(ref),
                               rtol=5e-2, atol=5e-3)
    print("KERNEL_OK")
</pallas_src>

<mosaic_0001>
module attributes {stable_mosaic.version = 11 : i64} {
  func.func @_ifft2_real_kernel(%arg0: i32, %arg1: i32, %arg2: memref<1x8x32xf32, #tpu.memory_space<vmem>>, %arg3: memref<1x32x64xbf16, #tpu.memory_space<vmem>>, %arg4: memref<8x16xbf16, #tpu.memory_space<vmem>>, %arg5: memref<1x8x32xf32, #tpu.memory_space<vmem>>) attributes {dimension_semantics = [#tpu.dimension_semantics<parallel>, #tpu.dimension_semantics<parallel>], iteration_bounds = array<i64: 2, 1>, scalar_prefetch = 0 : i64, scratch_operands = 0 : i64, tpu.core_type = #tpu.core_type<tc>, window_params = [{transform_indices = @transform_0, window_bounds = array<i64: 1, 8, 32>}, {pipeline_mode = #tpu.pipeline_mode<synchronous>, transform_indices = @transform_1, window_bounds = array<i64: 1, 32, 64>}, {pipeline_mode = #tpu.pipeline_mode<synchronous>, transform_indices = @transform_2, window_bounds = array<i64: 8, 16>}, {transform_indices = @transform_3, window_bounds = array<i64: 1, 8, 32>}]} {
    %c0 = arith.constant 0 : index
    %c0_0 = arith.constant 0 : index
    %c0_1 = arith.constant 0 : index
    %0 = vector.load %arg3[%c0, %c0_0, %c0_1] : memref<1x32x64xbf16, #tpu.memory_space<vmem>>, vector<1x32x64xbf16>
    %1 = vector.shape_cast %0 : vector<1x32x64xbf16> to vector<32x64xbf16>
    %c0_2 = arith.constant 0 : index
    %c0_3 = arith.constant 0 : index
    %2 = vector.load %arg4[%c0_2, %c0_3] : memref<8x16xbf16, #tpu.memory_space<vmem>>, vector<8x16xbf16>
    %c0_4 = arith.constant 0 : index
    %c0_5 = arith.constant 0 : index
    %c0_6 = arith.constant 0 : index
    %3 = vector.load %arg2[%c0_4, %c0_5, %c0_6] : memref<1x8x32xf32, #tpu.memory_space<vmem>>, vector<1x8x32xf32>
    %4 = vector.shape_cast %3 : vector<1x8x32xf32> to vector<8x32xf32>
    %5 = arith.truncf %4 : vector<8x32xf32> to vector<8x32xbf16>
    %cst = arith.constant dense<0.000000e+00> : vector<8x64xf32>
    %6 = tpu.matmul %5, %1, %cst {dimension_numbers = #tpu.dot_dimension_numbers<[1], [0], [0], [1], [0, 0, 1, 1], [], []>} : vector<8x32xbf16>, vector<32x64xbf16>, vector<8x64xf32> -> vector<8x64xf32>
    %7 = vector.extract_strided_slice %6 {offsets = [0, 0], sizes = [8, 32], strides = [1, 1]} : vector<8x64xf32> to vector<8x32xf32>
    %8 = arith.truncf %7 : vector<8x32xf32> to vector<8x32xbf16>
    %9 = vector.extract_strided_slice %6 {offsets = [0, 32], sizes = [8, 32], strides = [1, 1]} : vector<8x64xf32> to vector<8x32xf32>
    %10 = arith.truncf %9 : vector<8x32xf32> to vector<8x32xbf16>
    %11 = tpu.concatenate %8, %10 in 0 : vector<8x32xbf16>, vector<8x32xbf16> -> vector<16x32xbf16>
    %cst_7 = arith.constant dense<0.000000e+00> : vector<8x32xf32>
    %12 = tpu.matmul %2, %11, %cst_7 {dimension_numbers = #tpu.dot_dimension_numbers<[1], [0], [0], [1], [0, 0, 1, 1], [], []>} : vector<8x16xbf16>, vector<16x32xbf16>, vector<8x32xf32> -> vector<8x32xf32>
    %c0_8 = arith.constant 0 : index
    %c0_9 = arith.constant 0 : index
    %c0_10 = arith.constant 0 : index
    %13 = vector.load %arg5[%c0_8, %c0_9, %c0_10] : memref<1x8x32xf32, #tpu.memory_space<vmem>>, vector<1x8x32xf32>
    %14 = vector.shape_cast %13 : vector<1x8x32xf32> to vector<8x32xf32>
    %15 = vector.shape_cast %12 : vector<8x32xf32> to vector<1x8x32xf32>
    tpu.vector_store %arg5[%c0_8, %c0_9, %c0_10], %15 {strides = array<i32>} : memref<1x8x32xf32, #tpu.memory_space<vmem>>, vector<1x8x32xf32>,
    return
  }
  func.func @transform_0(%arg0: i32, %arg1: i32) -> (i32, i32, i32) {
    %c0_i32 = arith.constant 0 : i32
    %c0_i32_0 = arith.constant 0 : i32
    %c0_i32_1 = arith.constant 0 : i32
    return %arg0, %c0_i32, %c0_i32_0 : i32, i32, i32
  }
  func.func @transform_1(%arg0: i32, %arg1: i32) -> (i32, i32, i32) {
    %c0_i32 = arith.constant 0 : i32
    %c0_i32_0 = arith.constant 0 : i32
    %c0_i32_1 = arith.constant 0 : i32
    %c0_i32_2 = arith.constant 0 : i32
    return %c0_i32, %c0_i32_0, %c0_i32_1 : i32, i32, i32
  }
  func.func @transform_2(%arg0: i32, %arg1: i32) -> (i32, i32) {
    %c0_i32 = arith.constant 0 : i32
    %c0_i32_0 = arith.constant 0 : i32
    %c0_i32_1 = arith.constant 0 : i32
    return %c0_i32, %c0_i32_0 : i32, i32
  }
  func.func @transform_3(%arg0: i32, %arg1: i32) -> (i32, i32, i32) {
    %c0_i32 = arith.constant 0 : i32
    %c0_i32_0 = arith.constant 0 : i32
    return %arg0, %c0_i32, %arg1 : i32, i32, i32
  }
}

</mosaic_0001>

<llo_original>
// kernel: tpu_custom_call.1
$region0: #{tpu_custom_call.1}
  #allocation0 [shape = 'u32[]', space=smem, size = 0x4, offset = 0x4, fixed_abs, tag = 'smem constant byte address 0x4 - core index']
  #allocation1 [shape = 'u32[144,128]{1,0:T(1,128)}', space=vmem, size = 0x12000, scoped, tag = 'internal scratch']
  %s0 = inlined_call_operand.hbm [shape: f32[2,8,32], index: 0, kind: input, shape index: {}]
  %s1 = inlined_call_operand.hbm [shape: bf16[1,32,64], index: 1, kind: input, shape index: {}]
  %s2 = inlined_call_operand.vmem [shape: bf16[8,16], index: 2, kind: input, shape index: {}]
  %s3 = inlined_call_operand.hbm [shape: f32[2,8,32], index: 3, kind: output, shape index: {}]
  %s4 = sld [smem:[#allocation0]]
  $region53: #{tpu_custom_call.1} parent=0
    _
  %s6 = ssub.s32 1, %s4
  %s7 = scalar_select 0, %s6, %s4
  $region1: #{tpu_custom_call.1} parent=0
    #allocation2 [shape = 'u8[8192]{0}', space=vmem, size = 0x2000, scoped, tag = 'input window, operand 0']
    #allocation3 [shape = 's32[2]{0}', space=sflag, size = 0x8, scoped, tag = 'scoped memory for tpu_custom_call.1']
    #allocation4 [shape = 's32[2]{0}', space=sflag, size = 0x8, scoped, tag = 'scoped memory for tpu_custom_call.1']
    #allocation5 [shape = 'u8[8192]{0}', space=vmem, size = 0x2000, scoped, tag = 'input window, operand 1, single buffered']
    #allocation6 [shape = 's32[1]{0}', space=sflag, size = 0x4, scoped, tag = 'scoped memory for tpu_custom_call.1']
    #allocation7 [shape = 'u8[8192]{0}', space=vmem, size = 0x2000, scoped, tag = 'output window, operand 0']
    %8 = vsyncpa [#allocation3], 0
    %s9 = scalar_lea.sflag [#allocation3], 1
    %10 = vsyncpa %s9, 0
    %11 = vsyncpa [#allocation6], 0
    %12 = vsyncpa [#allocation4], 0
    %s13 = scalar_lea.sflag [#allocation4], 1
    %14 = vsyncpa %s13, 0
    loop: start=0, step=1, limit=4
    $region2: #{tpu_custom_call.1} parent=1 // loop_pre_header
      _
    $region3: #{tpu_custom_call.1} parent=1 // loop_header
      %s16 = sphi 0, %s20
      %p17 = scmp.ge.s32.totalorder %s16, 4
      %s23 = sphi 0, %s35
      %s24 = sphi 0, %s31
      %s25 = sphi 0, %s23
      %s26 = sphi 0, %s24
      %s27 = sphi 0, %s25
      %s28 = sphi 0, %s26
      %s38 = sphi 0, %s40
      %s41 = sphi 0, %s38
      %s42 = sphi 0, %s41
      %s58 = sphi 0, %s42
      %s62 = sphi 0, %s62
      %s64 = sphi 0, %s62
      %s65 = sphi 0, %s64
      %s79 = sphi 0, %s65
      %s83 = sphi 0, %s83
      %s85 = sphi 0, %s83
      %s86 = sphi 0, %s85
      %s100 = sphi 0, %s86
      %s108 = sphi 0, %s110
      %s111 = sphi 0, %s108
      %s112 = sphi 0, %s111
      %s128 = sphi 0, %s112
    $region4: #{tpu_custom_call.1} parent=1 // loop_header_branch
      %19 = sbr.rel (%p17) target = $region8
    $region5: #{tpu_custom_call.1} parent=1 // loop_body
      %s21 = ssub.s32 %s16, 1
      %s22 = ssub.s32 %s16, 2
      %s29 = sadd.s32 1, %s24
      %p30 = scmp.ge.s32.totalorder %s29, 1
      %s31 = scalar_select %p30, 0, %s29
      %s32 = sadd.s32 1, %s23
      %s33 = scalar_select %p30, %s32, %s23
      %p34 = scmp.ge.s32.totalorder %s33, 2
      %s35 = scalar_select %p34, 0, %s33
      %s36 = ssub.s32 %s23, %s35
      %p37 = scmp.eq.s32.totalorder %s36, 0
      %s39 = sadd.s32 %s38, 1
      %s40 = scalar_select %p37, %s38, %s39
      %p43 = pneg %p37
      %p44 = scmp.eq.s32.totalorder %s16, 1
      %p45 = por %p43, %p44
      %p46 = scmp.ne.s32.totalorder %s38, %s41
      %p47 = scmp.eq.s32.totalorder %s16, 0
      %p48 = por %p46, %p47
      %p49 = scmp.ne.s32.totalorder %s38, %s41
      %p50 = scmp.eq.s32.totalorder %s21, 1
      %p51 = por %p49, %p50
      %p52 = scmp.ne.s32.totalorder %s41, %s42
      %p53 = scmp.eq.s32.totalorder %s21, 0
      %p54 = por %p52, %p53
      %p55 = scmp.ne.s32.totalorder %s41, %s42
      %p56 = scmp.eq.s32.totalorder %s22, 1
      %p57 = por %p55, %p56
      %p59 = scmp.ne.s32.totalorder %s42, %s58
      %p60 = scmp.eq.s32.totalorder %s22, 0
      %p61 = por %p59, %p60
      %s63 = sadd.s32 %s62, 1
      %p66 = scmp.eq.s32.totalorder %s16, 1
      %p67 = scmp.ne.s32.totalorder %s62, %s64
      %p68 = scmp.eq.s32.totalorder %s16, 0
      %p69 = por %p67, %p68
      %p70 = scmp.ne.s32.totalorder %s62, %s64
      %p71 = scmp.eq.s32.totalorder %s21, 1
      %p72 = por %p70, %p71
      %p73 = scmp.ne.s32.totalorder %s64, %s65
      %p74 = scmp.eq.s32.totalorder %s21, 0
      %p75 = por %p73, %p74
      %p76 = scmp.ne.s32.totalorder %s64, %s65
      %p77 = scmp.eq.s32.totalorder %s22, 1
      %p78 = por %p76, %p77
      %p80 = scmp.ne.s32.totalorder %s65, %s79
      %p81 = scmp.eq.s32.totalorder %s22, 0
      %p82 = por %p80, %p81
      %s84 = sadd.s32 %s83, 1
      %p87 = scmp.eq.s32.totalorder %s16, 1
      %p88 = scmp.ne.s32.totalorder %s83, %s85
      %p89 = scmp.eq.s32.totalorder %s16, 0
      %p90 = por %p88, %p89
      %p91 = scmp.ne.s32.totalorder %s83, %s85
      %p92 = scmp.eq.s32.totalorder %s21, 1
      %p93 = por %p91, %p92
      %p94 = scmp.ne.s32.totalorder %s85, %s86
      %p95 = scmp.eq.s32.totalorder %s21, 0
      %p96 = por %p94, %p95
      %p97 = scmp.ne.s32.totalorder %s85, %s86
      %p98 = scmp.eq.s32.totalorder %s22, 1
      %p99 = por %p97, %p98
      %p101 = scmp.ne.s32.totalorder %s86, %s100
      %p102 = scmp.eq.s32.totalorder %s22, 0
      %p103 = por %p101, %p102
      %s104 = ssub.s32 %s23, %s35
      %s105 = ssub.s32 %s24, %s31
      %s106 = sor.u32 %s104, %s105
      %p107 = scmp.eq.s32.totalorder %s106, 0
      %s109 = sadd.s32 %s108, 1
      %s110 = scalar_select %p107, %s108, %s109
      %p113 = pneg %p107
      %p114 = scmp.eq.s32.totalorder %s16, 1
      %p115 = por %p113, %p114
      %p116 = scmp.ne.s32.totalorder %s108, %s111
      %p117 = scmp.eq.s32.totalorder %s16, 0
      %p118 = por %p116, %p117
      %p119 = scmp.ne.s32.totalorder %s108, %s111
      %p120 = scmp.eq.s32.totalorder %s21, 1
      %p121 = por %p119, %p120
      %p122 = scmp.ne.s32.totalorder %s111, %s112
      %p123 = scmp.eq.s32.totalorder %s21, 0
      %p124 = por %p122, %p123
      %p125 = scmp.ne.s32.totalorder %s111, %s112
      %p126 = scmp.eq.s32.totalorder %s22, 1
      %p127 = por %p125, %p126
      %p129 = scmp.ne.s32.totalorder %s112, %s128
      %p130 = scmp.eq.s32.totalorder %s22, 0
      %p131 = por %p129, %p130
      %p132 = scmp.le.s32.totalorder 1, %s16
      %p133 = scmp.lt.s32.totalorder %s16, 3
      %p134 = pnand %p132, %p133
      %p135 = pneg %p134
      // Predicated region
      $region9: #{tpu_custom_call.1} parent=5 // pred_check
        _
      $region10: #{tpu_custom_call.1} parent=5 // pred_check_branch
        %137 = sbr.rel (%p134) target = $region12
      $region11: #{tpu_custom_call.1} parent=5 // pred_region
        %s138 = ssub.s32 %s16, 1
        // Predicated region
        $region13: #{tpu_custom_call.1} parent=11 // pred_check
          %p139 = pneg %p75
        $region14: #{tpu_custom_call.1} parent=11 // pred_check_branch
          %141 = sbr.rel (%p139) target = $region16
        $region15: #{tpu_custom_call.1} parent=11 // pred_region
          %s143 = ssub.s32 256, 256
          %144 = vsyncadd [#allocation6], %s143
          %s145 = sshll.u32 [#allocation5], 4
          %s146 = int_to_ptr.vmem [resolvable:$true] %s145
          %151 = dma.hbm_to_vmem [thread:$0]  %s1, 256, %s146, [#allocation6], 64, 64, 4
        $region16: #{tpu_custom_call.1} parent=11 // pred_fallthru
          _
        // Predicated region
        $region17: #{tpu_custom_call.1} parent=11 // pred_check
          %p152 = pneg %p96
        $region18: #{tpu_custom_call.1} parent=11 // pred_check_branch
          %154 = sbr.rel (%p152) target = $region20
        $region19: #{tpu_custom_call.1} parent=11 // pred_region
          _
        $region20: #{tpu_custom_call.1} parent=11 // pred_fallthru
          _
      $region12: #{tpu_custom_call.1} parent=5 // pred_fallthru
        _
      %p155 = scmp.lt.s32.totalorder %s16, 2
      // Predicated region
      $region21: #{tpu_custom_call.1} parent=5 // pred_check
        %p156 = pneg %p155
      $region22: #{tpu_custom_call.1} parent=5 // pred_check_branch
        %158 = sbr.rel (%p156) target = $region24
      $region23: #{tpu_custom_call.1} parent=5 // pred_region
        // Predicated region
        $region25: #{tpu_custom_call.1} parent=23 // pred_check
          %p159 = pneg %p48
        $region26: #{tpu_custom_call.1} parent=23 // pred_check_branch
          %161 = sbr.rel (%p159) target = $region28
        $region27: #{tpu_custom_call.1} parent=23 // pred_region
          %s162 = sand.u32 %s38, 1
          %s163 = scalar_lea.sflag [#allocation3], %s162
          %s164 = sand.u32 %s38, 1
          %s165 = smul.addr %s164, 8
          %s166 = scalar_lea.vmem [#allocation2], %s165
          %s168 = ssub.s32 128, 128
          %169 = vsyncadd %s163, %s168
          %s170 = smul.addr %s23, 128
          %s171 = scalar_lea.hbm %s0, %s170
          %s173 = sshll.u32 %s166, 4
          %s174 = int_to_ptr.vmem [resolvable:$true] %s173
          %176 = dma.hbm_to_vmem [thread:$0]  %s171, 128, %s174, %s163
        $region28: #{tpu_custom_call.1} parent=23 // pred_fallthru
          _
      $region24: #{tpu_custom_call.1} parent=5 // pred_fallthru
        _
      %p177 = scmp.le.s32.totalorder 1, %s16
      %p178 = scmp.lt.s32.totalorder %s16, 3
      %p179 = pnand %p177, %p178
      %p180 = pneg %p179
      // Predicated region
      $region29: #{tpu_custom_call.1} parent=5 // pred_check
        _
      $region30: #{tpu_custom_call.1} parent=5 // pred_check_branch
        %182 = sbr.rel (%p179) target = $region32
      $region31: #{tpu_custom_call.1} parent=5 // pred_region
        %s183 = ssub.s32 %s16, 1
        %s184 = sand.u32 %s41, 1
        %s185 = scalar_lea.sflag [#allocation3], %s184
        %s186 = sand.u32 %s41, 1
        %s187 = smul.addr %s186, 8
        %s188 = scalar_lea.vmem [#allocation2], %s187
        // Predicated region
        $region33: #{tpu_custom_call.1} parent=31 // pred_check
          %p189 = pneg %p54
        $region34: #{tpu_custom_call.1} parent=31 // pred_check_branch
          %191 = sbr.rel (%p189) target = $region36
        $region35: #{tpu_custom_call.1} parent=31 // pred_region
          %192 = dma.done %s185, 128
        $region36: #{tpu_custom_call.1} parent=31 // pred_fallthru
          _
        // Predicated region
        $region37: #{tpu_custom_call.1} parent=31 // pred_check
          %p193 = pneg %p75
        $region38: #{tpu_custom_call.1} parent=31 // pred_check_branch
          %195 = sbr.rel (%p193) target = $region40
        $region39: #{tpu_custom_call.1} parent=31 // pred_region
          %196 = dma.done [#allocation6], 256
        $region40: #{tpu_custom_call.1} parent=31 // pred_fallthru
          _
        %s197 = sand.u32 %s41, 1
        %s198 = scalar_lea.sflag [#allocation3], %s197
        %s199 = sand.u32 %s41, 1
        %s200 = smul.addr %s199, 8
        %s201 = scalar_lea.vmem [#allocation2], %s200
        %p202 = pneg %p54
        %p203 = pneg %p51
        %p204 = pneg %p75
        %p205 = pneg %p72
        %p206 = pneg %p96
        %p207 = pneg %p93
        %p208 = pneg %p124
        %p209 = pneg %p121
        %s210 = sand.u32 %s111, 1
        %s211 = scalar_lea.sflag [#allocation4], %s210
        %s212 = sand.u32 %s111, 1
        %s213 = smul.addr %s212, 8
        %s214 = scalar_lea.vmem [#allocation7], %s213
        %v216 = vld [vmem:[#allocation5] sm:$0xf]
        %v217 = vld [vmem:[#allocation5 + $0x4] sm:$0xf]
        %v218 = vld [vmem:[#allocation5 + $0x8] sm:$0xf]
        %v219 = vld [vmem:[#allocation5 + $0xc] sm:$0xf]
        %v220 = vld [vmem:[%s2] sm:$0xf]
        %v221 = vld [vmem:[%s188] sm:$0xff]
        %v222 = vpack.c.bf16 %v221, %v221
        %v227 = vunpack.c.l.b16 %v216
        %v228 = vunpack.c.l.b16 %v217
        %v229 = vunpack.c.l.b16 %v218
        %v230 = vunpack.c.l.b16 %v219
        %v231 = vpack.c.b16 %v228, %v227
        %v232 = vpack.c.b16 %v230, %v229
        %vm235 = vcmask 261120
        %v237 = vsel %vm235, %v222, 0
        %239 = vmatprep.subr.bf16.mxu0 0
        %240 = vmatpush1.bf16.msra.mxu0 %v231
        %241 = vmatprep.subr.bf16.mxu0 0
        %242 = vmatpush1.bf16.msra.mxu0 %v232
        %243 = vmatprep.subr.bf16.mxu0 0
        %244 = vmatpush1.bf16.msra.mxu0 0
        %245 = vmatprep.subr.bf16.mxu0 0
        %246 = vmatpush1.bf16.msra.mxu0 0
        %247 = vmatprep.subr.bf16.mxu0 0
        %248 = vmatpush1.bf16.msra.mxu0 0
        %249 = vmatprep.subr.bf16.mxu0 0
        %250 = vmatpush1.bf16.msra.mxu0 0
        %251 = vmatprep.subr.bf16.mxu0 0
        %252 = vmatpush1.bf16.msra.mxu0 0
        %253 = vmatprep.subr.bf16.mxu0 0
        %254 = vmatpush1.bf16.msra.mxu0 0
        %255 = vmatprep.subr.bf16.mxu0 0
        %256 = vmatpush1.bf16.msra.mxu0 0
        %257 = vmatprep.subr.bf16.mxu0 0
        %258 = vmatpush1.bf16.msra.mxu0 0
        %259 = vmatprep.subr.bf16.mxu0 0
        %260 = vmatpush1.bf16.msra.mxu0 0
        %261 = vmatprep.subr.bf16.mxu0 0
        %262 = vmatpush1.bf16.msra.mxu0 0
        %263 = vmatprep.subr.bf16.mxu0 0
        %264 = vmatpush1.bf16.msra.mxu0 0
        %265 = vmatprep.subr.bf16.mxu0 0
        %266 = vmatpush1.bf16.msra.mxu0 0
        %267 = vmatprep.subr.bf16.mxu0 0
        %268 = vmatpush1.bf16.msra.mxu0 0
        %269 = vmatprep.subr.bf16.mxu0 0
        %270 = vmatpush1.bf16.msra.mxu0 0
        %271 = vmatprep.mubr.bf16.mxu0 0
        %272 = vmatmul.mubr.bf16.gmra.mrb[0].mxu0 %v237
        %v273 = vpop.f32.mrb[0].mxu0
        %v274 = vadd.f32 0.0, %v273
        %v275 = vpop.f32.mrb[0].mxu0
        %v276 = vpop.f32.mrb[0].mxu0
        %v277 = vpop.f32.mrb[0].mxu0
        %278 = vdwg.mxu0
        %v279 = vpack.c.bf16 %v274, %v274
        %v281 = vrot.slane %v279, 4
        %282 = vrot.lane.b32.xlu0 %v281, 96
        %v283 = vpop.permute.xlu0 %282
        %vm284 = vcmask 1043456
        %v287 = vsel %vm284, %v279, %v283
        %vm289 = vcmask 130048
        %v291 = vsel %vm289, %v220, 0
        %293 = vmatprep.subr.bf16.mxu0 0
        %294 = vmatpush1.bf16.msra.mxu0 %v287
        %295 = vmatprep.subr.bf16.mxu0 0
        %296 = vmatpush1.bf16.msra.mxu0 0
        %297 = vmatprep.subr.bf16.mxu0 0
        %298 = vmatpush1.bf16.msra.mxu0 0
        %299 = vmatprep.subr.bf16.mxu0 0
        %300 = vmatpush1.bf16.msra.mxu0 0
        %301 = vmatprep.subr.bf16.mxu0 0
        %302 = vmatpush1.bf16.msra.mxu0 0
        %303 = vmatprep.subr.bf16.mxu0 0
        %304 = vmatpush1.bf16.msra.mxu0 0
        %305 = vmatprep.subr.bf16.mxu0 0
        %306 = vmatpush1.bf16.msra.mxu0 0
        %307 = vmatprep.subr.bf16.mxu0 0
        %308 = vmatpush1.bf16.msra.mxu0 0
        %309 = vmatprep.subr.bf16.mxu0 0
        %310 = vmatpush1.bf16.msra.mxu0 0
        %311 = vmatprep.subr.bf16.mxu0 0
        %312 = vmatpush1.bf16.msra.mxu0 0
        %313 = vmatprep.subr.bf16.mxu0 0
        %314 = vmatpush1.bf16.msra.mxu0 0
        %315 = vmatprep.subr.bf16.mxu0 0
        %316 = vmatpush1.bf16.msra.mxu0 0
        %317 = vmatprep.subr.bf16.mxu0 0
        %318 = vmatpush1.bf16.msra.mxu0 0
        %319 = vmatprep.subr.bf16.mxu0 0
        %320 = vmatpush1.bf16.msra.mxu0 0
        %321 = vmatprep.subr.bf16.mxu0 0
        %322 = vmatpush1.bf16.msra.mxu0 0
        %323 = vmatprep.subr.bf16.mxu0 0
        %324 = vmatpush1.bf16.msra.mxu0 0
        %325 = vmatprep.mubr.bf16.mxu0 0
        %326 = vmatmul.mubr.bf16.gmra.mrb[0].mxu0 %v291
        %v327 = vpop.f32.mrb[0].mxu0
        %v328 = vadd.f32 0.0, %v327
        %v329 = vpop.f32.mrb[0].mxu0
        %v330 = vpop.f32.mrb[0].mxu0
        %v331 = vpop.f32.mrb[0].mxu0
        %332 = vdwg.mxu0
        %333 = vst.msk [vmem:[%s214] sm:$0xff] %vm235, %v328
        %s334 = sand.u32 %s111, 1
        %s335 = scalar_lea.sflag [#allocation4], %s334
        %s336 = sand.u32 %s111, 1
        %s337 = smul.addr %s336, 8
        %s338 = scalar_lea.vmem [#allocation7], %s337
        // Predicated region
        $region41: #{tpu_custom_call.1} parent=31 // pred_check
          %p339 = pneg %p121
        $region42: #{tpu_custom_call.1} parent=31 // pred_check_branch
          %341 = sbr.rel (%p339) target = $region44
        $region43: #{tpu_custom_call.1} parent=31 // pred_region
          %s343 = ssub.s32 128, 128
          %344 = vsyncadd %s335, %s343
          %s345 = sadd.s32 %s26, %s25
          %s346 = smul.addr %s345, 128
          %s347 = scalar_lea.hbm %s3, %s346
          %s349 = sshll.u32 %s338, 4
          %s350 = int_to_ptr.vmem [resolvable:$true] %s349
          %352 = dma.vmem_to_hbm [thread:$0]  %s350, 128, %s347, %s335
        $region44: #{tpu_custom_call.1} parent=31 // pred_fallthru
          _
      $region32: #{tpu_custom_call.1} parent=5 // pred_fallthru
        _
      %p353 = scmp.le.s32.totalorder 2, %s16
      // Predicated region
      $region45: #{tpu_custom_call.1} parent=5 // pred_check
        %p354 = pneg %p353
      $region46: #{tpu_custom_call.1} parent=5 // pred_check_branch
        %356 = sbr.rel (%p354) target = $region48
      $region47: #{tpu_custom_call.1} parent=5 // pred_region
        %s357 = ssub.s32 %s16, 2
        // Predicated region
        $region49: #{tpu_custom_call.1} parent=47 // pred_check
          %p358 = pneg %p127
        $region50: #{tpu_custom_call.1} parent=47 // pred_check_branch
          %360 = sbr.rel (%p358) target = $region52
        $region51: #{tpu_custom_call.1} parent=47 // pred_region
          %s361 = sand.u32 %s112, 1
          %s362 = scalar_lea.sflag [#allocation4], %s361
          %s363 = sand.u32 %s112, 1
          %s364 = smul.addr %s363, 8
          %s365 = scalar_lea.vmem [#allocation7], %s364
          %366 = dma.done %s362, 128
        $region52: #{tpu_custom_call.1} parent=47 // pred_fallthru
          _
      $region48: #{tpu_custom_call.1} parent=5 // pred_fallthru
        _
    $region6: #{tpu_custom_call.1} parent=1 // loop_footer
      %s20 = sadd.s32 1, %s16
    $region7: #{tpu_custom_call.1} parent=1 // loop_footer_branch
      %15 = sbr.rel target = $region3
    $region8: #{tpu_custom_call.1} parent=1 // loop_exit
      _
    %367 = vsyncpa [#allocation3], 1
    %s368 = scalar_lea.sflag [#allocation3], 1
    %369 = vsyncpa %s368, 1
    %370 = vsyncpa [#allocation6], 1
    %371 = vsyncpa [#allocation4], 1
    %s372 = scalar_lea.sflag [#allocation4], 1
    %373 = vsyncpa %s372, 1

</llo_original>
